<compile_context>
chip_gen: v7x
topology: tpu7x:2x2x1
jax: 0.10.0
libtpu: 0.0.40
codegen_flags: <defaults>
</compile_context>

<pallas_src>
import jax
import jax.numpy as jnp
from jax.experimental import pallas as pl
from jax.experimental.pallas import tpu as pltpu

IN_FEATURES = 20
OUT_FEATURES = 30
TM_MAX = 4096      # large-batch M tile (sweep 2048-4096); ~8 MiB double-buffered VMEM
SMALL_M = 256      # at/below this, use a single whole-array block (no grid steps)


def _round_up(v, m):
    return (v + m - 1) // m * m


def linear_kernel(x_ref, w_ref, b_ref, o_ref):
    # x_ref: (tm, K)  w_ref: (K, N)  b_ref: (1, N)  o_ref: (tm, N)
    acc = jnp.dot(x_ref[...], w_ref[...], preferred_element_type=jnp.float32)
    o_ref[...] = (acc + b_ref[...]).astype(o_ref.dtype)


def prepare_params(w, b):
    """One-time param prep: transpose (N, K) -> (K, N) and reshape bias to (1, N).

    No lane padding: the output is written at its true 30-wide shape (masked
    vst is fine here; the kernel is HBM/overhead bound, not store-slot bound).
    """
    return w.T, b.reshape(1, -1)


def linear_forward(x, w_kn, b_row):
    """x @ W.T + b (PyTorch nn.Linear semantics) via a single Pallas matmul."""
    M, K = x.shape
    K2, N = w_kn.shape
    assert K == K2

    # M-tile selection:
    #  * tiny M      -> one whole-array block (no pipeline-step overhead)
    #  * moderate M  -> >= 2 parallel grid steps so v7x's 2nd TC gets work
    #  * large M     -> TM_MAX-row tiles, ragged last block masked by Pallas
    if M <= SMALL_M:
        tm = M
    elif M <= TM_MAX:
        tm = max(8, _round_up(pl.cdiv(M, 2), 8))
    else:
        tm = TM_MAX

    grid = (pl.cdiv(M, tm),)

    cost = pl.CostEstimate(
        flops=2 * M * K * N,
        transcendentals=0,
        bytes_accessed=4 * (M * K + K * N + N + M * N),
    )

    return pl.pallas_call(
        linear_kernel,
        out_shape=jax.ShapeDtypeStruct((M, N), x.dtype),
        grid=grid,
        in_specs=[
            pl.BlockSpec((tm, K), lambda i: (i, 0), memory_space=pltpu.VMEM),
            pl.BlockSpec((K, N), lambda i: (0, 0), memory_space=pltpu.VMEM),
            pl.BlockSpec((1, N), lambda i: (0, 0), memory_space=pltpu.VMEM),
        ],
        out_specs=pl.BlockSpec((tm, N), lambda i: (i, 0),
                               memory_space=pltpu.VMEM),
        compiler_params=pltpu.CompilerParams(
            dimension_semantics=("parallel",)),
        cost_estimate=cost,
    )(x, w_kn, b_row)


def init_params(key, in_features=IN_FEATURES, out_features=OUT_FEATURES):
    # Deterministic init mirroring torch.nn.Linear defaults:
    # U(-1/sqrt(in_features), 1/sqrt(in_features)) for both weight and bias.
    kw, kb = jax.random.split(key)
    bound = 1.0 / jnp.sqrt(jnp.float32(in_features))
    w = jax.random.uniform(kw, (out_features, in_features), jnp.float32,
                           minval=-bound, maxval=bound)
    b = jax.random.uniform(kb, (out_features,), jnp.float32,
                           minval=-bound, maxval=bound)
    return w, b


if __name__ == "__main__":
    key = jax.random.PRNGKey(0)
    k_x, k_p = jax.random.split(key)

    batch = 8
    x = jax.random.normal(k_x, (batch, IN_FEATURES), jnp.float32)
    w, b = init_params(k_p)

    # One-time parameter preparation (transpose + bias reshape), outside the hot path.
    w_kn, b_row = prepare_params(w, b)

    out = linear_forward(x, w_kn, b_row)
    jax.block_until_ready(out)

    # Sanity check against plain-JAX reference of the same Linear.
    ref = x @ w.T + b
    assert out.shape == (batch, OUT_FEATURES)
    assert jnp.allclose(out, ref, atol=1e-5, rtol=1e-5)

    print("KERNEL_OK")
</pallas_src>

<mosaic_0001>
module attributes {stable_mosaic.version = 11 : i64} {
  func.func @linear_kernel(%arg0: i32, %arg1: memref<8x20xf32, #tpu.memory_space<vmem>>, %arg2: memref<20x30xf32, #tpu.memory_space<vmem>>, %arg3: memref<1x30xf32, #tpu.memory_space<vmem>>, %arg4: memref<8x30xf32, #tpu.memory_space<vmem>>) attributes {dimension_semantics = [#tpu.dimension_semantics<parallel>], iteration_bounds = array<i64: 1>, scalar_prefetch = 0 : i64, scratch_operands = 0 : i64, tpu.core_type = #tpu.core_type<tc>, window_params = [{transform_indices = @transform_0, window_bounds = array<i64: 8, 20>}, {pipeline_mode = #tpu.pipeline_mode<synchronous>, transform_indices = @transform_1, window_bounds = array<i64: 20, 30>}, {pipeline_mode = #tpu.pipeline_mode<synchronous>, transform_indices = @transform_2, window_bounds = array<i64: 1, 30>}, {transform_indices = @transform_3, window_bounds = array<i64: 8, 30>}]} {
    %c0 = arith.constant 0 : index
    %c0_0 = arith.constant 0 : index
    %0 = vector.load %arg1[%c0, %c0_0] : memref<8x20xf32, #tpu.memory_space<vmem>>, vector<8x20xf32>
    %c0_1 = arith.constant 0 : index
    %c0_2 = arith.constant 0 : index
    %1 = vector.load %arg2[%c0_1, %c0_2] : memref<20x30xf32, #tpu.memory_space<vmem>>, vector<20x30xf32>
    %cst = arith.constant dense<0.000000e+00> : vector<8x30xf32>
    %2 = tpu.matmul %0, %1, %cst {dimension_numbers = #tpu.dot_dimension_numbers<[1], [0], [0], [1], [0, 0, 1, 1], [], []>} : vector<8x20xf32>, vector<20x30xf32>, vector<8x30xf32> -> vector<8x30xf32>
    %c0_3 = arith.constant 0 : index
    %c0_4 = arith.constant 0 : index
    %3 = vector.load %arg3[%c0_3, %c0_4] : memref<1x30xf32, #tpu.memory_space<vmem>>, vector<1x30xf32>
    %4 = vector.broadcast %3 : vector<1x30xf32> to vector<8x30xf32>
    %5 = arith.addf %2, %4 : vector<8x30xf32>
    %c0_5 = arith.constant 0 : index
    %c0_6 = arith.constant 0 : index
    %6 = vector.load %arg4[%c0_5, %c0_6] : memref<8x30xf32, #tpu.memory_space<vmem>>, vector<8x30xf32>
    tpu.vector_store %arg4[%c0_5, %c0_6], %5 {strides = array<i32>} : memref<8x30xf32, #tpu.memory_space<vmem>>, vector<8x30xf32>,
    return
  }
  func.func @transform_0(%arg0: i32) -> (i32, i32) {
    %c0_i32 = arith.constant 0 : i32
    %c0_i32_0 = arith.constant 0 : i32
    return %arg0, %c0_i32 : i32, i32
  }
  func.func @transform_1(%arg0: i32) -> (i32, i32) {
    %c0_i32 = arith.constant 0 : i32
    %c0_i32_0 = arith.constant 0 : i32
    %c0_i32_1 = arith.constant 0 : i32
    return %c0_i32, %c0_i32_0 : i32, i32
  }
  func.func @transform_2(%arg0: i32) -> (i32, i32) {
    %c0_i32 = arith.constant 0 : i32
    %c0_i32_0 = arith.constant 0 : i32
    %c0_i32_1 = arith.constant 0 : i32
    return %c0_i32, %c0_i32_0 : i32, i32
  }
  func.func @transform_3(%arg0: i32) -> (i32, i32) {
    %c0_i32 = arith.constant 0 : i32
    %c0_i32_0 = arith.constant 0 : i32
    return %arg0, %c0_i32 : i32, i32
  }
}

</mosaic_0001>

<llo_original>
// kernel: tpu_custom_call.1
$region0: #{tpu_custom_call.1}
  #allocation0 [shape = 'u32[]', space=smem, size = 0x4, offset = 0x4, fixed_abs, tag = 'smem constant byte address 0x4 - core index']
  #allocation1 [shape = 'u32[144,128]{1,0:T(1,128)}', space=vmem, size = 0x12000, scoped, tag = 'internal scratch']
  %s0 = inlined_call_operand.hbm [shape: f32[8,20], index: 0, kind: input, shape index: {}]
  %s1 = inlined_call_operand.hbm [shape: f32[20,30], index: 1, kind: input, shape index: {}]
  %s2 = inlined_call_operand.vmem [shape: f32[1,30], index: 2, kind: input, shape index: {}]
  %s3 = inlined_call_operand.hbm [shape: f32[8,30], index: 3, kind: output, shape index: {}]
  %s4 = sld [smem:[#allocation0]]
  $region30: #{tpu_custom_call.1} parent=0
    _
  %s6 = ssub.s32 1, %s4
  %s7 = scalar_select 0, %s6, %s4
  $region1: #{tpu_custom_call.1} parent=0
    #allocation2 [shape = 'u8[4096]{0}', space=vmem, size = 0x1000, scoped, tag = 'input window, operand 0, single buffered']
    #allocation3 [shape = 's32[1]{0}', space=sflag, size = 0x4, scoped, tag = 'scoped memory for tpu_custom_call.1']
    #allocation4 [shape = 's32[1]{0}', space=sflag, size = 0x4, scoped, tag = 'scoped memory for tpu_custom_call.1']
    #allocation5 [shape = 'u8[12288]{0}', space=vmem, size = 0x3000, scoped, tag = 'input window, operand 1, single buffered']
    #allocation6 [shape = 's32[1]{0}', space=sflag, size = 0x4, scoped, tag = 'scoped memory for tpu_custom_call.1']
    #allocation7 [shape = 'u8[4096]{0}', space=vmem, size = 0x1000, scoped, tag = 'output window, operand 0, single buffered']
    %8 = vsyncpa [#allocation3], 0
    %9 = vsyncpa [#allocation6], 0
    %10 = vsyncpa [#allocation4], 0
    // Predicated region
    $region2: #{tpu_custom_call.1} parent=1 // pred_check
      _
    $region3: #{tpu_custom_call.1} parent=1 // pred_check_branch
      %12 = sbr.rel (0) target = $region5
    $region4: #{tpu_custom_call.1} parent=1 // pred_region
      %s14 = ssub.s32 128, 128
      %15 = vsyncadd [#allocation3], %s14
      %s17 = sshll.u32 [#allocation2], 4
      %s18 = int_to_ptr.vmem [resolvable:$true] %s17
      %20 = dma.hbm_to_vmem [thread:$0]  %s0, 128, %s18, [#allocation3]
    $region5: #{tpu_custom_call.1} parent=1 // pred_fallthru
      _
    // Predicated region
    $region6: #{tpu_custom_call.1} parent=1 // pred_check
      _
    $region7: #{tpu_custom_call.1} parent=1 // pred_check_branch
      %22 = sbr.rel (0) target = $region9
    $region8: #{tpu_custom_call.1} parent=1 // pred_region
      %s24 = ssub.s32 384, 384
      %25 = vsyncadd [#allocation6], %s24
      %s26 = sshll.u32 [#allocation5], 4
      %s27 = int_to_ptr.vmem [resolvable:$true] %s26
      %32 = dma.hbm_to_vmem [thread:$0]  %s1, 384, %s27, [#allocation6], 128, 128, 8
    $region9: #{tpu_custom_call.1} parent=1 // pred_fallthru
      _
    // Predicated region
    $region10: #{tpu_custom_call.1} parent=1 // pred_check
      _
    $region11: #{tpu_custom_call.1} parent=1 // pred_check_branch
      %34 = sbr.rel (0) target = $region13
    $region12: #{tpu_custom_call.1} parent=1 // pred_region
      _
    $region13: #{tpu_custom_call.1} parent=1 // pred_fallthru
      _
    // Predicated region
    $region14: #{tpu_custom_call.1} parent=1 // pred_check
      _
    $region15: #{tpu_custom_call.1} parent=1 // pred_check_branch
      %36 = sbr.rel (0) target = $region17
    $region16: #{tpu_custom_call.1} parent=1 // pred_region
      %37 = dma.done [#allocation3], 128
    $region17: #{tpu_custom_call.1} parent=1 // pred_fallthru
      _
    // Predicated region
    $region18: #{tpu_custom_call.1} parent=1 // pred_check
      _
    $region19: #{tpu_custom_call.1} parent=1 // pred_check_branch
      %39 = sbr.rel (0) target = $region21
    $region20: #{tpu_custom_call.1} parent=1 // pred_region
      %40 = dma.done [#allocation6], 384
    $region21: #{tpu_custom_call.1} parent=1 // pred_fallthru
      _
    %v41 = vld [vmem:[#allocation2] sm:$0xff]
    %v42 = vld [vmem:[#allocation5] sm:$0xff]
    %v43 = vld [vmem:[#allocation5 + $0x8] sm:$0xff]
    %v44 = vld [vmem:[#allocation5 + $0x10] sm:$0xf]
    %v45 = vld [vmem:[%s2] sm:$0x1]
    %v47 = vlaneseq
    %v48 = vshrl.u32 %v47, 7
    %v49 = vsub.s32 0, %v48
    %v50 = vrot.slane %v45, %v49
    %vm52 = vcmask 162816
    %v54 = vsel %vm52, %v41, 0
    %vm56 = vcmask 1043456
    %v58 = vsel %vm56, %v44, 0
    %60 = vmatprep.subr.mxu0 0.0
    %61 = vmatpush1.msra.mxu0 %v42
    %62 = vmatprep.subr.mxu0 0.0
    %63 = vmatpush1.msra.mxu0 %v43
    %64 = vmatprep.subr.mxu0 0.0
    %65 = vmatpush1.msra.mxu0 %v58
    %66 = vmatprep.subr.mxu0 0.0
    %67 = vmatpush1.msra.mxu0 0.0
    %68 = vmatprep.subr.mxu0 0.0
    %69 = vmatpush1.msra.mxu0 0.0
    %70 = vmatprep.subr.mxu0 0.0
    %71 = vmatpush1.msra.mxu0 0.0
    %72 = vmatprep.subr.mxu0 0.0
    %73 = vmatpush1.msra.mxu0 0.0
    %74 = vmatprep.subr.mxu0 0.0
    %75 = vmatpush1.msra.mxu0 0.0
    %76 = vmatprep.subr.mxu0 0.0
    %77 = vmatpush1.msra.mxu0 0.0
    %78 = vmatprep.subr.mxu0 0.0
    %79 = vmatpush1.msra.mxu0 0.0
    %80 = vmatprep.subr.mxu0 0.0
    %81 = vmatpush1.msra.mxu0 0.0
    %82 = vmatprep.subr.mxu0 0.0
    %83 = vmatpush1.msra.mxu0 0.0
    %84 = vmatprep.subr.mxu0 0.0
    %85 = vmatpush1.msra.mxu0 0.0
    %86 = vmatprep.subr.mxu0 0.0
    %87 = vmatpush1.msra.mxu0 0.0
    %88 = vmatprep.subr.mxu0 0.0
    %89 = vmatpush1.msra.mxu0 0.0
    %90 = vmatprep.subr.mxu0 0.0
    %91 = vmatpush1.msra.mxu0 0.0
    %92 = vmatprep.subr.mxu0 0.0
    %93 = vmatpush1.msra.mxu0 0.0
    %94 = vmatprep.subr.mxu0 0.0
    %95 = vmatpush1.msra.mxu0 0.0
    %96 = vmatprep.subr.mxu0 0.0
    %97 = vmatpush1.msra.mxu0 0.0
    %98 = vmatprep.subr.mxu0 0.0
    %99 = vmatpush1.msra.mxu0 0.0
    %100 = vmatprep.subr.mxu0 0.0
    %101 = vmatpush1.msra.mxu0 0.0
    %102 = vmatprep.subr.mxu0 0.0
    %103 = vmatpush1.msra.mxu0 0.0
    %104 = vmatprep.subr.mxu0 0.0
    %105 = vmatpush1.msra.mxu0 0.0
    %106 = vmatprep.subr.mxu0 0.0
    %107 = vmatpush1.msra.mxu0 0.0
    %108 = vmatprep.subr.mxu0 0.0
    %109 = vmatpush1.msra.mxu0 0.0
    %110 = vmatprep.subr.mxu0 0.0
    %111 = vmatpush1.msra.mxu0 0.0
    %112 = vmatprep.subr.mxu0 0.0
    %113 = vmatpush1.msra.mxu0 0.0
    %114 = vmatprep.subr.mxu0 0.0
    %115 = vmatpush1.msra.mxu0 0.0
    %116 = vmatprep.subr.mxu0 0.0
    %117 = vmatpush1.msra.mxu0 0.0
    %118 = vmatprep.subr.mxu0 0.0
    %119 = vmatpush1.msra.mxu0 0.0
    %120 = vmatprep.subr.mxu0 0.0
    %121 = vmatpush1.msra.mxu0 0.0
    %122 = vmatprep.subr.mxu0 0.0
    %123 = vmatpush1.msra.mxu0 0.0
    %124 = vmatprep.mubr.f32.mxu0 0.0
    %125 = vmatmul.mubr.f32.gmra.mrb[0].mxu0 %v54
    %v126 = vpop.f32.mrb[0].mxu0
    %v127 = vadd.f32 %v50, %v126
    %v128 = vpop.f32.mrb[0].mxu0
    %129 = vdwg.mxu0
    %vm130 = vcmask 244736
    %131 = vst.msk [vmem:[#allocation7] sm:$0xff] %vm130, %v127
    // Predicated region
    $region22: #{tpu_custom_call.1} parent=1 // pred_check
      _
    $region23: #{tpu_custom_call.1} parent=1 // pred_check_branch
      %133 = sbr.rel (0) target = $region25
    $region24: #{tpu_custom_call.1} parent=1 // pred_region
      %s135 = ssub.s32 128, 128
      %136 = vsyncadd [#allocation4], %s135
      %s138 = sshll.u32 [#allocation7], 4
      %s139 = int_to_ptr.vmem [resolvable:$true] %s138
      %141 = dma.vmem_to_hbm [thread:$0]  %s139, 128, %s3, [#allocation4]
    $region25: #{tpu_custom_call.1} parent=1 // pred_fallthru
      _
    // Predicated region
    $region26: #{tpu_custom_call.1} parent=1 // pred_check
      _
    $region27: #{tpu_custom_call.1} parent=1 // pred_check_branch
      %143 = sbr.rel (0) target = $region29
    $region28: #{tpu_custom_call.1} parent=1 // pred_region
      %144 = dma.done [#allocation4], 128
    $region29: #{tpu_custom_call.1} parent=1 // pred_fallthru
      _
    %145 = vsyncpa [#allocation3], 1
    %146 = vsyncpa [#allocation6], 1
    %147 = vsyncpa [#allocation4], 1

</llo_original>
